<compile_context>
chip_gen: v7x
topology: tpu7x:2x2x1
jax: 0.10.0
libtpu: 0.0.40
codegen_flags: <defaults>
</compile_context>

<pallas_src>
import math

import jax
import jax.numpy as jnp
from jax.experimental import pallas as pl
from jax.experimental.pallas import tpu as pltpu


def _adv_loss_kernel(fake_ref, real_ref, loss_d_ref, loss_g_ref):
    x = fake_ref[...].astype(jnp.float32)   # d_fake_logits tile
    r = real_ref[...].astype(jnp.float32)   # d_real_logits tile

    # Numerically-stable softplus: sp(t) = relu(t) + log1p(exp(-|t|)) = log(1+exp(t))
    sp_x = jnp.maximum(x, 0.0) + jnp.log1p(jnp.exp(-jnp.abs(x)))
    sp_r = jnp.maximum(r, 0.0) + jnp.log1p(jnp.exp(-jnp.abs(r)))

    # sce(x, 1) = sp_x - x ;  sce(x, 0) = sp_x ;  sce(r, 1) = sp_r - r
    loss_g_ref[...] = (sp_x - x).astype(loss_g_ref.dtype)
    loss_d_ref[...] = (sp_x + (sp_r - r)).astype(loss_d_ref.dtype)


# ~1 MiB per f32 block buffer; with double-buffering over 2 inputs + 2 outputs
# that is 8 MiB VMEM, safely under the default scoped limit on all chips.
_TARGET_BLOCK_ELEMS = 256 * 1024


def _layout(total):
    """Pick (lane, tile_rows, padded_rows) for a lane-dense (rows, lane) slab."""
    # Widest lane (multiple of 128) that still leaves >= 8 rows of real data.
    lane = 128
    for cand in (2048, 1024, 512, 256):
        if total >= cand * 8:
            lane = cand
            break
    rows = -(-total // lane)
    max_rows = max(8, _TARGET_BLOCK_ELEMS // lane)
    if rows <= max_rows:
        # Single full-extent block (exempt from the (8,128) divisibility rule).
        return lane, rows, rows
    tile_rows = max_rows - (max_rows % 8)           # keep sublane-aligned
    padded_rows = -(-rows // tile_rows) * tile_rows
    return lane, tile_rows, padded_rows


def adv_loss(d_fake_logits, d_real_logits):
    """Returns (loss_d, loss_g), elementwise, same shape/dtype as the inputs."""
    assert d_fake_logits.shape == d_real_logits.shape
    orig_shape = d_fake_logits.shape
    dtype = d_fake_logits.dtype
    total = math.prod(orig_shape) if orig_shape else 1

    lane, tile_rows, padded_rows = _layout(total)
    padded_total = padded_rows * lane
    pad = padded_total - total

    fake_flat = d_fake_logits.reshape(-1)
    real_flat = d_real_logits.reshape(-1)
    if pad:
        fake_flat = jnp.pad(fake_flat, (0, pad))
        real_flat = jnp.pad(real_flat, (0, pad))

    fake2d = fake_flat.reshape(padded_rows, lane)
    real2d = real_flat.reshape(padded_rows, lane)

    grid = (padded_rows // tile_rows,)
    spec = pl.BlockSpec((tile_rows, lane), lambda i: (i, 0))

    loss_d2d, loss_g2d = pl.pallas_call(
        _adv_loss_kernel,
        out_shape=(jax.ShapeDtypeStruct((padded_rows, lane), dtype),
                   jax.ShapeDtypeStruct((padded_rows, lane), dtype)),
        grid=grid,
        in_specs=[spec, spec],
        out_specs=(spec, spec),
        compiler_params=pltpu.CompilerParams(
            dimension_semantics=("parallel",)),
    )(fake2d, real2d)

    loss_d = loss_d2d.reshape(-1)[:total].reshape(orig_shape)
    loss_g = loss_g2d.reshape(-1)[:total].reshape(orig_shape)
    return loss_d, loss_g


def _reference(d_fake, d_real):
    def sce(logits, labels):
        return (jnp.maximum(logits, 0.0)
                - logits * labels
                + jnp.log(1.0 + jnp.exp(-jnp.abs(logits))))
    loss_g = sce(d_fake, jnp.ones_like(d_fake))
    loss_d = sce(d_fake, jnp.zeros_like(d_fake)) + sce(d_real, jnp.ones_like(d_real))
    return loss_d, loss_g


def _check(fake, real):
    loss_d, loss_g = adv_loss(fake, real)
    jax.block_until_ready((loss_d, loss_g))
    ref_d, ref_g = _reference(fake, real)
    assert loss_d.shape == fake.shape and loss_d.dtype == fake.dtype
    assert loss_g.shape == fake.shape and loss_g.dtype == fake.dtype
    assert jnp.allclose(loss_d, ref_d, atol=1e-5, rtol=1e-5)
    assert jnp.allclose(loss_g, ref_g, atol=1e-5, rtol=1e-5)


if __name__ == "__main__":
    key = jax.random.PRNGKey(0)
    k1, k2, k3, k4, k5, k6 = jax.random.split(key, 6)

    # Case 1: discriminator patch-logits in NCHW: (batch=2, channels=1, H=16, W=16)
    _check(jax.random.normal(k1, (2, 1, 16, 16), dtype=jnp.float32) * 2.0,
           jax.random.normal(k2, (2, 1, 16, 16), dtype=jnp.float32) * 2.0)

    # Case 2: non-128-divisible size exercises the padding path (2, 3, 7, 5)
    _check(jax.random.normal(k3, (2, 3, 7, 5), dtype=jnp.float32) * 2.0,
           jax.random.normal(k4, (2, 3, 7, 5), dtype=jnp.float32) * 2.0)

    # Case 3: larger patch map exercises the multi-block (grid > 1) path
    _check(jax.random.normal(k5, (2, 4, 160, 256), dtype=jnp.float32) * 2.0,
           jax.random.normal(k6, (2, 4, 160, 256), dtype=jnp.float32) * 2.0)

    print("KERNEL_OK")
</pallas_src>

<mosaic_0001>
module attributes {stable_mosaic.version = 11 : i64} {
  func.func @_adv_loss_kernel(%arg0: i32, %arg1: memref<4x128xf32, #tpu.memory_space<vmem>>, %arg2: memref<4x128xf32, #tpu.memory_space<vmem>>, %arg3: memref<4x128xf32, #tpu.memory_space<vmem>>, %arg4: memref<4x128xf32, #tpu.memory_space<vmem>>) attributes {dimension_semantics = [#tpu.dimension_semantics<parallel>], iteration_bounds = array<i64: 1>, scalar_prefetch = 0 : i64, scratch_operands = 0 : i64, tpu.core_type = #tpu.core_type<tc>, window_params = [{transform_indices = @transform_0, window_bounds = array<i64: 4, 128>}, {transform_indices = @transform_1, window_bounds = array<i64: 4, 128>}, {transform_indices = @transform_2, window_bounds = array<i64: 4, 128>}, {transform_indices = @transform_3, window_bounds = array<i64: 4, 128>}]} {
    %c0 = arith.constant 0 : index
    %c0_0 = arith.constant 0 : index
    %0 = vector.load %arg1[%c0, %c0_0] : memref<4x128xf32, #tpu.memory_space<vmem>>, vector<4x128xf32>
    %c0_1 = arith.constant 0 : index
    %c0_2 = arith.constant 0 : index
    %1 = vector.load %arg2[%c0_1, %c0_2] : memref<4x128xf32, #tpu.memory_space<vmem>>, vector<4x128xf32>
    %cst = arith.constant 0.000000e+00 : f32
    %2 = vector.broadcast %cst : f32 to vector<4x128xf32>
    %3 = arith.maximumf %0, %2 : vector<4x128xf32>
    %4 = math.absf %0 : vector<4x128xf32>
    %cst_3 = arith.constant 0.000000e+00 : f32
    %5 = vector.broadcast %cst_3 : f32 to vector<4x128xf32>
    %6 = arith.subf %5, %4 : vector<4x128xf32>
    %7 = math.exp %6 : vector<4x128xf32>
    %8 = math.log1p %7 : vector<4x128xf32>
    %9 = arith.addf %3, %8 : vector<4x128xf32>
    %cst_4 = arith.constant 0.000000e+00 : f32
    %10 = vector.broadcast %cst_4 : f32 to vector<4x128xf32>
    %11 = arith.maximumf %1, %10 : vector<4x128xf32>
    %12 = math.absf %1 : vector<4x128xf32>
    %cst_5 = arith.constant 0.000000e+00 : f32
    %13 = vector.broadcast %cst_5 : f32 to vector<4x128xf32>
    %14 = arith.subf %13, %12 : vector<4x128xf32>
    %15 = math.exp %14 : vector<4x128xf32>
    %16 = math.log1p %15 : vector<4x128xf32>
    %17 = arith.addf %11, %16 : vector<4x128xf32>
    %18 = arith.subf %9, %0 : vector<4x128xf32>
    %c0_6 = arith.constant 0 : index
    %c0_7 = arith.constant 0 : index
    %19 = vector.load %arg4[%c0_6, %c0_7] : memref<4x128xf32, #tpu.memory_space<vmem>>, vector<4x128xf32>
    tpu.vector_store %arg4[%c0_6, %c0_7], %18 {strides = array<i32>} : memref<4x128xf32, #tpu.memory_space<vmem>>, vector<4x128xf32>,
    %20 = arith.subf %17, %1 : vector<4x128xf32>
    %21 = arith.addf %9, %20 : vector<4x128xf32>
    %c0_8 = arith.constant 0 : index
    %c0_9 = arith.constant 0 : index
    %22 = vector.load %arg3[%c0_8, %c0_9] : memref<4x128xf32, #tpu.memory_space<vmem>>, vector<4x128xf32>
    tpu.vector_store %arg3[%c0_8, %c0_9], %21 {strides = array<i32>} : memref<4x128xf32, #tpu.memory_space<vmem>>, vector<4x128xf32>,
    return
  }
  func.func @transform_0(%arg0: i32) -> (i32, i32) {
    %c0_i32 = arith.constant 0 : i32
    %c0_i32_0 = arith.constant 0 : i32
    return %arg0, %c0_i32 : i32, i32
  }
  func.func @transform_1(%arg0: i32) -> (i32, i32) {
    %c0_i32 = arith.constant 0 : i32
    %c0_i32_0 = arith.constant 0 : i32
    return %arg0, %c0_i32 : i32, i32
  }
  func.func @transform_2(%arg0: i32) -> (i32, i32) {
    %c0_i32 = arith.constant 0 : i32
    %c0_i32_0 = arith.constant 0 : i32
    return %arg0, %c0_i32 : i32, i32
  }
  func.func @transform_3(%arg0: i32) -> (i32, i32) {
    %c0_i32 = arith.constant 0 : i32
    %c0_i32_0 = arith.constant 0 : i32
    return %arg0, %c0_i32 : i32, i32
  }
}

</mosaic_0001>

<llo_original>
// kernel: tpu_custom_call.1
$region0: #{tpu_custom_call.1}
  #allocation0 [shape = 'u32[]', space=smem, size = 0x4, offset = 0x4, fixed_abs, tag = 'smem constant byte address 0x4 - core index']
  #allocation1 [shape = 'u32[144,128]{1,0:T(1,128)}', space=vmem, size = 0x12000, scoped, tag = 'internal scratch']
  %s0 = inlined_call_operand.hbm [shape: f32[4,128], index: 0, kind: input, shape index: {}]
  %s1 = inlined_call_operand.hbm [shape: f32[4,128], index: 1, kind: input, shape index: {}]
  %s2 = inlined_call_operand.hbm [shape: f32[4,128], index: 2, kind: output, shape index: {0}]
  %s3 = inlined_call_operand.hbm [shape: f32[4,128], index: 3, kind: output, shape index: {1}]
  %4 = xla_tuple %s2, %s3
  %s5 = sld [smem:[#allocation0]]
  $region34: #{tpu_custom_call.1} parent=0
    _
  %s7 = ssub.s32 1, %s5
  %s8 = scalar_select 0, %s7, %s5
  $region1: #{tpu_custom_call.1} parent=0
    #allocation2 [shape = 'u8[2048]{0}', space=vmem, size = 0x800, scoped, tag = 'input window, operand 0, single buffered']
    #allocation3 [shape = 's32[1]{0}', space=sflag, size = 0x4, scoped, tag = 'scoped memory for tpu_custom_call.1']
    #allocation4 [shape = 's32[1]{0}', space=sflag, size = 0x4, scoped, tag = 'scoped memory for tpu_custom_call.1']
    #allocation5 [shape = 'u8[2048]{0}', space=vmem, size = 0x800, scoped, tag = 'input window, operand 1, single buffered']
    #allocation6 [shape = 's32[1]{0}', space=sflag, size = 0x4, scoped, tag = 'scoped memory for tpu_custom_call.1']
    #allocation7 [shape = 'u8[2048]{0}', space=vmem, size = 0x800, scoped, tag = 'output window, operand 0, single buffered']
    #allocation8 [shape = 'u8[2048]{0}', space=vmem, size = 0x800, scoped, tag = 'output window, operand 1, single buffered']
    #allocation9 [shape = 's32[1]{0}', space=sflag, size = 0x4, scoped, tag = 'scoped memory for tpu_custom_call.1']
    %9 = vsyncpa [#allocation3], 0
    %10 = vsyncpa [#allocation6], 0
    %11 = vsyncpa [#allocation4], 0
    %12 = vsyncpa [#allocation9], 0
    // Predicated region
    $region2: #{tpu_custom_call.1} parent=1 // pred_check
      _
    $region3: #{tpu_custom_call.1} parent=1 // pred_check_branch
      %14 = sbr.rel (0) target = $region5
    $region4: #{tpu_custom_call.1} parent=1 // pred_region
      %s16 = ssub.s32 64, 64
      %17 = vsyncadd [#allocation3], %s16
      %s19 = sshll.u32 [#allocation2], 4
      %s20 = int_to_ptr.vmem [resolvable:$true] %s19
      %22 = dma.hbm_to_vmem [thread:$0]  %s0, 64, %s20, [#allocation3]
    $region5: #{tpu_custom_call.1} parent=1 // pred_fallthru
      _
    // Predicated region
    $region6: #{tpu_custom_call.1} parent=1 // pred_check
      _
    $region7: #{tpu_custom_call.1} parent=1 // pred_check_branch
      %24 = sbr.rel (0) target = $region9
    $region8: #{tpu_custom_call.1} parent=1 // pred_region
      %s26 = ssub.s32 64, 64
      %27 = vsyncadd [#allocation6], %s26
      %s29 = sshll.u32 [#allocation5], 4
      %s30 = int_to_ptr.vmem [resolvable:$true] %s29
      %32 = dma.hbm_to_vmem [thread:$0]  %s1, 64, %s30, [#allocation6]
    $region9: #{tpu_custom_call.1} parent=1 // pred_fallthru
      _
    // Predicated region
    $region10: #{tpu_custom_call.1} parent=1 // pred_check
      _
    $region11: #{tpu_custom_call.1} parent=1 // pred_check_branch
      %34 = sbr.rel (0) target = $region13
    $region12: #{tpu_custom_call.1} parent=1 // pred_region
      %35 = dma.done [#allocation3], 64
    $region13: #{tpu_custom_call.1} parent=1 // pred_fallthru
      _
    // Predicated region
    $region14: #{tpu_custom_call.1} parent=1 // pred_check
      _
    $region15: #{tpu_custom_call.1} parent=1 // pred_check_branch
      %37 = sbr.rel (0) target = $region17
    $region16: #{tpu_custom_call.1} parent=1 // pred_region
      %38 = dma.done [#allocation6], 64
    $region17: #{tpu_custom_call.1} parent=1 // pred_fallthru
      _
    %v39 = vld [vmem:[#allocation2] sm:$0xf]
    %v40 = vld [vmem:[#allocation5] sm:$0xf]
    %v41 = vmax.f32 %v39, 0.0
    %v42 = vand.u32 2147483647, %v39
    %v43 = vsub.f32 0.0, %v42
    %v44 = vmul.f32 %v43, 1.442695
    %v45 = vpow.pop %v44
    %v46 = vadd.f32 %v45, 1.0
    %v47 = vlog2.pop %v46
    %v48 = vmul.f32 %v47, 0.6931472
    %v49 = vmul.f32 -0.5, %v45
    %v50 = vadd.f32 %v49, 1.0
    %v51 = vmul.f32 %v50, %v45
    %v52 = vand.u32 2147483647, %v45
    %vm53 = vcmp.lt.f32.partialorder %v52, 0.0004427343
    %v54 = vsel %vm53, %v51, %v48
    %v55 = vadd.f32 %v41, %v54
    %v56 = vmax.f32 %v40, 0.0
    %v57 = vand.u32 2147483647, %v40
    %v58 = vsub.f32 0.0, %v57
    %v59 = vmul.f32 %v58, 1.442695
    %v60 = vpow.pop %v59
    %v61 = vadd.f32 %v60, 1.0
    %v62 = vlog2.pop %v61
    %v63 = vmul.f32 %v62, 0.6931472
    %v64 = vmul.f32 -0.5, %v60
    %v65 = vadd.f32 %v64, 1.0
    %v66 = vmul.f32 %v65, %v60
    %v67 = vand.u32 2147483647, %v60
    %vm68 = vcmp.lt.f32.partialorder %v67, 0.0004427343
    %v69 = vsel %vm68, %v66, %v63
    %v70 = vadd.f32 %v56, %v69
    %v71 = vsub.f32 %v55, %v39
    %72 = vst [vmem:[#allocation8] sm:$0xf] %v71
    %v73 = vsub.f32 %v70, %v40
    %v74 = vadd.f32 %v55, %v73
    %75 = vst [vmem:[#allocation7] sm:$0xf] %v74
    // Predicated region
    $region18: #{tpu_custom_call.1} parent=1 // pred_check
      _
    $region19: #{tpu_custom_call.1} parent=1 // pred_check_branch
      %77 = sbr.rel (0) target = $region21
    $region20: #{tpu_custom_call.1} parent=1 // pred_region
      %s79 = ssub.s32 64, 64
      %80 = vsyncadd [#allocation4], %s79
      %s82 = sshll.u32 [#allocation7], 4
      %s83 = int_to_ptr.vmem [resolvable:$true] %s82
      %85 = dma.vmem_to_hbm [thread:$0]  %s83, 64, %s2, [#allocation4]
    $region21: #{tpu_custom_call.1} parent=1 // pred_fallthru
      _
    // Predicated region
    $region22: #{tpu_custom_call.1} parent=1 // pred_check
      _
    $region23: #{tpu_custom_call.1} parent=1 // pred_check_branch
      %87 = sbr.rel (0) target = $region25
    $region24: #{tpu_custom_call.1} parent=1 // pred_region
      %s89 = ssub.s32 64, 64
      %90 = vsyncadd [#allocation9], %s89
      %s92 = sshll.u32 [#allocation8], 4
      %s93 = int_to_ptr.vmem [resolvable:$true] %s92
      %95 = dma.vmem_to_hbm [thread:$0]  %s93, 64, %s3, [#allocation9]
    $region25: #{tpu_custom_call.1} parent=1 // pred_fallthru
      _
    // Predicated region
    $region26: #{tpu_custom_call.1} parent=1 // pred_check
      _
    $region27: #{tpu_custom_call.1} parent=1 // pred_check_branch
      %97 = sbr.rel (0) target = $region29
    $region28: #{tpu_custom_call.1} parent=1 // pred_region
      %98 = dma.done [#allocation4], 64
    $region29: #{tpu_custom_call.1} parent=1 // pred_fallthru
      _
    // Predicated region
    $region30: #{tpu_custom_call.1} parent=1 // pred_check
      _
    $region31: #{tpu_custom_call.1} parent=1 // pred_check_branch
      %100 = sbr.rel (0) target = $region33
    $region32: #{tpu_custom_call.1} parent=1 // pred_region
      %101 = dma.done [#allocation9], 64
    $region33: #{tpu_custom_call.1} parent=1 // pred_fallthru
      _
    %102 = vsyncpa [#allocation3], 1
    %103 = vsyncpa [#allocation6], 1
    %104 = vsyncpa [#allocation4], 1
    %105 = vsyncpa [#allocation9], 1

</llo_original>
